<compile_context>
chip_gen: v6e
topology: v6e:2x2x1
jax: 0.10.0
libtpu: 0.0.40
codegen_flags: <defaults>
</compile_context>

<pallas_src>
import jax
import jax.numpy as jnp
from jax.experimental import pallas as pl
from jax.experimental.pallas import tpu as pltpu


def _round_up(v: int, m: int) -> int:
    return ((v + m - 1) // m) * m


def _choose_batch_tile(B: int, block_b: int) -> int:
    """Pick the batch tile (rows per grid step).

    - Small batch (< 32): a single block covering the full batch dim (full-extent block
      dims are always legal, so no padding / no ragged tile).
    - Larger batch: multiple of 16 (bf16 sublane packing), capped at block_b, and capped
      so there are >= 2 grid steps (v7x has 2 TensorCores to feed).
    """
    if B < 32:
        return B
    tb = min(block_b, _round_up(B, 16))
    tb = min(tb, _round_up(pl.cdiv(B, 2), 16))   # guarantee >= 2 grid steps
    return max(tb, 16)


def _proj_norm_kernel(x_ref, w_ref, b_ref, o_ref):
    # x: [tb, H] (bf16 preferred), w: [H, P_pad] bf16 (pre-cast, grid-resident),
    # b: [1, P_pad] f32, o: [tb, P_pad].
    x = x_ref[...]
    if x.dtype != jnp.bfloat16:          # no-op when the producer already feeds bf16
        x = x.astype(jnp.bfloat16)

    # MXU matmul: bf16 operands, f32 accumulation; f32 bias add.
    y = jnp.dot(x, w_ref[...], preferred_element_type=jnp.float32)
    y = y + b_ref[...]

    # L2 normalize per row in f32. torch F.normalize: denom = max(||y||_2, 1e-12),
    # equivalently inv = rsqrt(max(||y||^2, 1e-24)). Padded lanes are exactly zero
    # (zero weight columns + zero bias), so they do not perturb the norm.
    sq = jnp.sum(y * y, axis=-1, keepdims=True)
    inv = jax.lax.rsqrt(jnp.maximum(sq, 1e-24))   # single EUP op per row
    o_ref[...] = (y * inv).astype(o_ref.dtype)


def text_encoder_forward(cls_embeddings, weight_t, bias, *,
                         block_b: int = 1024,
                         out_dtype=jnp.float32,
                         trim_lanes: bool = True):
    """Projection + L2-normalize (TextEncoder head) as a single Pallas kernel.

    Args:
      cls_embeddings: [B, H] — BERT [CLS] embeddings. bf16 recommended (halves the
                      dominant HBM stream); f32 also accepted (cast in-kernel).
      weight_t:       [H, P] — nn.Linear weight, pre-transposed (torch weight.T).
      bias:           [P]    — nn.Linear bias.
      block_b:        max batch rows per grid step.
      out_dtype:      output dtype (f32 matches the module; bf16 halves write traffic).
      trim_lanes:     if True, slice the lane-padded output back to P columns
                      (module-exact shape). Pass False to keep the lane-dense
                      (B, P_pad) result and skip that extra HBM pass (padded columns
                      are exactly zero).
    Returns:
      [B, P] (or [B, P_pad] if trim_lanes=False), rows L2-normalized.
    """
    B, H = cls_embeddings.shape
    Hw, P = weight_t.shape
    assert Hw == H, (Hw, H)

    # Lane-dense output: pad P up to a multiple of 128 with zero columns (norm unchanged).
    P_pad = _round_up(P, 128)

    # Parameters are prepared once, outside the grid loop (ideally done at load time by
    # the caller): bf16 weight halves its resident VMEM and one-time DMA; bias stays f32.
    w = weight_t.astype(jnp.bfloat16)
    b2 = bias.astype(jnp.float32).reshape(1, P)
    if P_pad != P:
        w = jnp.pad(w, ((0, 0), (0, P_pad - P)))
        b2 = jnp.pad(b2, ((0, 0), (0, P_pad - P)))

    tb = _choose_batch_tile(B, block_b)

    out = pl.pallas_call(
        _proj_norm_kernel,
        out_shape=jax.ShapeDtypeStruct((B, P_pad), out_dtype),
        grid_spec=pl.GridSpec(
            grid=(pl.cdiv(B, tb),),
            in_specs=[
                pl.BlockSpec((tb, H), lambda i: (i, 0)),      # activations: tiled over batch
                pl.BlockSpec((H, P_pad), lambda i: (0, 0)),   # weight: VMEM-resident
                pl.BlockSpec((1, P_pad), lambda i: (0, 0)),   # bias:   VMEM-resident
            ],
            out_specs=pl.BlockSpec((tb, P_pad), lambda i: (i, 0)),
        ),
        compiler_params=pltpu.CompilerParams(
            # Independent batch tiles: shardable across v7x's two TensorCores.
            dimension_semantics=("parallel",),
        ),
    )(cls_embeddings, w, b2)

    if trim_lanes and P_pad != P:
        out = out[:, :P]
    return out


if __name__ == "__main__":
    # Small shapes consistent with the forward pass:
    #   batch=8 "texts", hidden=64 (stand-in for BERT hidden=768),
    #   projection_dim=200 (the module's default).
    B, H, P = 8, 64, 200

    key = jax.random.PRNGKey(0)
    k_x, k_w, k_b = jax.random.split(key, 3)

    # Synthetic CLS embeddings (stand-in for frozen BERT output), produced in bf16 —
    # the recommended input dtype (halves the dominant HBM stream).
    cls_embeddings = jax.random.normal(k_x, (B, H), dtype=jnp.float32).astype(jnp.bfloat16)

    # Deterministic nn.Linear(H, P) parameters (uniform(-1/sqrt(H), 1/sqrt(H))).
    bound = 1.0 / jnp.sqrt(jnp.float32(H))
    weight = jax.random.uniform(k_w, (P, H), minval=-bound, maxval=bound,
                                dtype=jnp.float32)          # torch layout [out, in]
    bias = jax.random.uniform(k_b, (P,), minval=-bound, maxval=bound,
                              dtype=jnp.float32)
    weight_t = weight.T                                      # [H, P] for the kernel

    out = text_encoder_forward(cls_embeddings, weight_t, bias)
    out = jax.block_until_ready(out)
    assert out.shape == (B, P)

    # Pure-JAX reference of the same math (bf16 operands, f32 accumulate — the kernel's
    # documented operating point), with torch F.normalize semantics.
    ref_y = jnp.dot(cls_embeddings, weight_t.astype(jnp.bfloat16),
                    preferred_element_type=jnp.float32) + bias[None, :]
    ref = ref_y / jnp.maximum(jnp.linalg.norm(ref_y, axis=-1, keepdims=True), 1e-12)
    assert jnp.allclose(out, ref, atol=2e-3, rtol=2e-3)

    # Rows are unit-norm.
    norms = jnp.linalg.norm(out, axis=-1)
    assert jnp.allclose(norms, jnp.ones_like(norms), atol=1e-3)

    print("KERNEL_OK")
</pallas_src>

<mosaic_0001>
module attributes {stable_mosaic.version = 11 : i64} {
  func.func @_proj_norm_kernel(%arg0: i32, %arg1: memref<8x64xbf16, #tpu.memory_space<vmem>>, %arg2: memref<64x256xbf16, #tpu.memory_space<vmem>>, %arg3: memref<1x256xf32, #tpu.memory_space<vmem>>, %arg4: memref<8x256xf32, #tpu.memory_space<vmem>>) attributes {dimension_semantics = [#tpu.dimension_semantics<parallel>], iteration_bounds = array<i64: 1>, scalar_prefetch = 0 : i64, scratch_operands = 0 : i64, tpu.core_type = #tpu.core_type<tc>, window_params = [{transform_indices = @transform_0, window_bounds = array<i64: 8, 64>}, {pipeline_mode = #tpu.pipeline_mode<synchronous>, transform_indices = @transform_1, window_bounds = array<i64: 64, 256>}, {pipeline_mode = #tpu.pipeline_mode<synchronous>, transform_indices = @transform_2, window_bounds = array<i64: 1, 256>}, {transform_indices = @transform_3, window_bounds = array<i64: 8, 256>}]} {
    %c0 = arith.constant 0 : index
    %c0_0 = arith.constant 0 : index
    %0 = vector.load %arg1[%c0, %c0_0] : memref<8x64xbf16, #tpu.memory_space<vmem>>, vector<8x64xbf16>
    %c0_1 = arith.constant 0 : index
    %c0_2 = arith.constant 0 : index
    %1 = vector.load %arg2[%c0_1, %c0_2] : memref<64x256xbf16, #tpu.memory_space<vmem>>, vector<64x256xbf16>
    %cst = arith.constant dense<0.000000e+00> : vector<8x256xf32>
    %2 = tpu.matmul %0, %1, %cst {dimension_numbers = #tpu.dot_dimension_numbers<[1], [0], [0], [1], [0, 0, 1, 1], [], []>} : vector<8x64xbf16>, vector<64x256xbf16>, vector<8x256xf32> -> vector<8x256xf32>
    %c0_3 = arith.constant 0 : index
    %c0_4 = arith.constant 0 : index
    %3 = vector.load %arg3[%c0_3, %c0_4] : memref<1x256xf32, #tpu.memory_space<vmem>>, vector<1x256xf32>
    %4 = vector.broadcast %3 : vector<1x256xf32> to vector<8x256xf32>
    %5 = arith.addf %2, %4 : vector<8x256xf32>
    %6 = arith.mulf %5, %5 : vector<8x256xf32>
    %cst_5 = arith.constant dense<0.000000e+00> : vector<8xf32>
    %7 = vector.multi_reduction <add>, %6, %cst_5 [1] : vector<8x256xf32> to vector<8xf32>
    %8 = vector.shape_cast %7 : vector<8xf32> to vector<8x1xf32>
    %cst_6 = arith.constant 1.000000e-24 : f32
    %9 = vector.broadcast %cst_6 : f32 to vector<8x1xf32>
    %10 = arith.maximumf %8, %9 : vector<8x1xf32>
    %11 = math.rsqrt %10 : vector<8x1xf32>
    %12 = vector.broadcast %11 : vector<8x1xf32> to vector<8x256xf32>
    %13 = arith.mulf %5, %12 : vector<8x256xf32>
    %c0_7 = arith.constant 0 : index
    %c0_8 = arith.constant 0 : index
    %14 = vector.load %arg4[%c0_7, %c0_8] : memref<8x256xf32, #tpu.memory_space<vmem>>, vector<8x256xf32>
    tpu.vector_store %arg4[%c0_7, %c0_8], %13 {strides = array<i32>} : memref<8x256xf32, #tpu.memory_space<vmem>>, vector<8x256xf32>,
    return
  }
  func.func @transform_0(%arg0: i32) -> (i32, i32) {
    %c0_i32 = arith.constant 0 : i32
    %c0_i32_0 = arith.constant 0 : i32
    return %arg0, %c0_i32 : i32, i32
  }
  func.func @transform_1(%arg0: i32) -> (i32, i32) {
    %c0_i32 = arith.constant 0 : i32
    %c0_i32_0 = arith.constant 0 : i32
    %c0_i32_1 = arith.constant 0 : i32
    return %c0_i32, %c0_i32_0 : i32, i32
  }
  func.func @transform_2(%arg0: i32) -> (i32, i32) {
    %c0_i32 = arith.constant 0 : i32
    %c0_i32_0 = arith.constant 0 : i32
    %c0_i32_1 = arith.constant 0 : i32
    return %c0_i32, %c0_i32_0 : i32, i32
  }
  func.func @transform_3(%arg0: i32) -> (i32, i32) {
    %c0_i32 = arith.constant 0 : i32
    %c0_i32_0 = arith.constant 0 : i32
    return %arg0, %c0_i32 : i32, i32
  }
}

</mosaic_0001>

<llo_original>
// kernel: tpu_custom_call.1
$region0: #{tpu_custom_call.1}
  #allocation0 [shape = 'u32[]', space=smem, size = 0x4, offset = 0x4, fixed_abs, tag = 'smem constant byte address 0x4 - core index']
  #allocation1 [shape = 'u32[144,128]{1,0:T(1,128)}', space=vmem, size = 0x12000, scoped, tag = 'internal scratch']
  %s0 = inlined_call_operand.hbm [shape: bf16[8,64], index: 0, kind: input, shape index: {}]
  %s1 = inlined_call_operand.hbm [shape: bf16[64,256], index: 1, kind: input, shape index: {}]
  %s2 = inlined_call_operand.vmem [shape: f32[1,256], index: 2, kind: input, shape index: {}]
  %s3 = inlined_call_operand.hbm [shape: f32[8,256], index: 3, kind: output, shape index: {}]
  %s4 = sld [smem:[#allocation0]]
  $region30: #{tpu_custom_call.1} parent=0
    _
  %s6 = ssub.s32 1, %s4
  %s7 = scalar_select 0, %s6, %s4
  $region1: #{tpu_custom_call.1} parent=0
    #allocation2 [shape = 'u8[2048]{0}', space=vmem, size = 0x800, scoped, tag = 'input window, operand 0, single buffered']
    #allocation3 [shape = 's32[1]{0}', space=sflag, size = 0x4, scoped, tag = 'scoped memory for tpu_custom_call.1']
    #allocation4 [shape = 's32[1]{0}', space=sflag, size = 0x4, scoped, tag = 'scoped memory for tpu_custom_call.1']
    #allocation5 [shape = 'u8[32768]{0}', space=vmem, size = 0x8000, scoped, tag = 'input window, operand 1, single buffered']
    #allocation6 [shape = 's32[1]{0}', space=sflag, size = 0x4, scoped, tag = 'scoped memory for tpu_custom_call.1']
    #allocation7 [shape = 'u8[8192]{0}', space=vmem, size = 0x2000, scoped, tag = 'output window, operand 0, single buffered']
    %8 = vsyncpa [#allocation3], 0
    %9 = vsyncpa [#allocation6], 0
    %10 = vsyncpa [#allocation4], 0
    // Predicated region
    $region2: #{tpu_custom_call.1} parent=1 // pred_check
      _
    $region3: #{tpu_custom_call.1} parent=1 // pred_check_branch
      %12 = sbr.rel (0) target = $region5
    $region4: #{tpu_custom_call.1} parent=1 // pred_region
      %s14 = ssub.s32 64, 64
      %15 = vsyncadd [#allocation3], %s14
      %s17 = sshll.u32 [#allocation2], 4
      %s18 = int_to_ptr.vmem [resolvable:$true] %s17
      %20 = dma.hbm_to_vmem [thread:$0]  %s0, 64, %s18, [#allocation3]
    $region5: #{tpu_custom_call.1} parent=1 // pred_fallthru
      _
    // Predicated region
    $region6: #{tpu_custom_call.1} parent=1 // pred_check
      _
    $region7: #{tpu_custom_call.1} parent=1 // pred_check_branch
      %22 = sbr.rel (0) target = $region9
    $region8: #{tpu_custom_call.1} parent=1 // pred_region
      %s24 = ssub.s32 1024, 1024
      %25 = vsyncadd [#allocation6], %s24
      %s26 = sshll.u32 [#allocation5], 4
      %s27 = int_to_ptr.vmem [resolvable:$true] %s26
      %32 = dma.hbm_to_vmem [thread:$0]  %s1, 1024, %s27, [#allocation6], 128, 128, 8
    $region9: #{tpu_custom_call.1} parent=1 // pred_fallthru
      _
    // Predicated region
    $region10: #{tpu_custom_call.1} parent=1 // pred_check
      _
    $region11: #{tpu_custom_call.1} parent=1 // pred_check_branch
      %34 = sbr.rel (0) target = $region13
    $region12: #{tpu_custom_call.1} parent=1 // pred_region
      _
    $region13: #{tpu_custom_call.1} parent=1 // pred_fallthru
      _
    // Predicated region
    $region14: #{tpu_custom_call.1} parent=1 // pred_check
      _
    $region15: #{tpu_custom_call.1} parent=1 // pred_check_branch
      %36 = sbr.rel (0) target = $region17
    $region16: #{tpu_custom_call.1} parent=1 // pred_region
      %37 = dma.done [#allocation3], 64
    $region17: #{tpu_custom_call.1} parent=1 // pred_fallthru
      _
    // Predicated region
    $region18: #{tpu_custom_call.1} parent=1 // pred_check
      _
    $region19: #{tpu_custom_call.1} parent=1 // pred_check_branch
      %39 = sbr.rel (0) target = $region21
    $region20: #{tpu_custom_call.1} parent=1 // pred_region
      %40 = dma.done [#allocation6], 1024
    $region21: #{tpu_custom_call.1} parent=1 // pred_fallthru
      _
    %v42 = vld [vmem:[#allocation2] sm:$0xf]
    %v43 = vld [vmem:[#allocation5] sm:$0xff]
    %v44 = vld [vmem:[#allocation5 + $0x8] sm:$0xff]
    %v45 = vld [vmem:[#allocation5 + $0x10] sm:$0xff]
    %v46 = vld [vmem:[#allocation5 + $0x18] sm:$0xff]
    %v47 = vld [vmem:[#allocation5 + $0x20] sm:$0xff]
    %v48 = vld [vmem:[#allocation5 + $0x28] sm:$0xff]
    %v49 = vld [vmem:[#allocation5 + $0x30] sm:$0xff]
    %v50 = vld [vmem:[#allocation5 + $0x38] sm:$0xff]
    %v51 = vld [vmem:[%s2] sm:$0x3]
    %v53 = vlaneseq
    %v54 = vshrl.u32 %v53, 7
    %v55 = vsub.s32 0, %v54
    %v56 = vrot.slane %v51, %v55
    %v57 = vlaneseq
    %v58 = vshrl.u32 %v57, 7
    %v59 = vsub.s32 1, %v58
    %v60 = vrot.slane %v51, %v59
    %v71 = vunpack.c.l.b16 %v43
    %v72 = vunpack.c.h.b16 %v43
    %v73 = vunpack.c.l.b16 %v44
    %v74 = vunpack.c.h.b16 %v44
    %v75 = vunpack.c.l.b16 %v45
    %v76 = vunpack.c.h.b16 %v45
    %v77 = vunpack.c.l.b16 %v46
    %v78 = vunpack.c.h.b16 %v46
    %v79 = vunpack.c.l.b16 %v47
    %v80 = vunpack.c.h.b16 %v47
    %v81 = vunpack.c.l.b16 %v48
    %v82 = vunpack.c.h.b16 %v48
    %v83 = vunpack.c.l.b16 %v49
    %v84 = vunpack.c.h.b16 %v49
    %v85 = vunpack.c.l.b16 %v50
    %v86 = vunpack.c.h.b16 %v50
    %v87 = vpack.c.b16 %v73, %v71
    %v88 = vpack.c.b16 %v74, %v72
    %v89 = vpack.c.b16 %v77, %v75
    %v90 = vpack.c.b16 %v78, %v76
    %v91 = vpack.c.b16 %v81, %v79
    %v92 = vpack.c.b16 %v82, %v80
    %v93 = vpack.c.b16 %v85, %v83
    %v94 = vpack.c.b16 %v86, %v84
    %vm103 = vcmask 523264
    %v105 = vsel %vm103, %v42, 0
    %107 = vmatprep.subr.bf16.mxu0 0
    %108 = vmatpush1.bf16.msra.mxu0 0
    %109 = vmatprep.subr.bf16.mxu0 0
    %110 = vmatpush1.bf16.msra.mxu0 0
    %111 = vmatprep.subr.bf16.mxu0 0
    %112 = vmatpush1.bf16.msra.mxu0 0
    %113 = vmatprep.subr.bf16.mxu0 0
    %114 = vmatpush1.bf16.msra.mxu0 0
    %115 = vmatprep.subr.bf16.mxu0 %v94
    %116 = vmatpush1.bf16.msra.mxu0 %v93
    %117 = vmatprep.subr.bf16.mxu0 %v92
    %118 = vmatpush1.bf16.msra.mxu0 %v91
    %119 = vmatprep.subr.bf16.mxu0 %v90
    %120 = vmatpush1.bf16.msra.mxu0 %v89
    %121 = vmatprep.subr.bf16.mxu0 %v88
    %122 = vmatpush1.bf16.msra.mxu0 %v87
    %123 = vmatprep.subr.bf16.mxu0 0
    %124 = vmatpush2.bf16.msra.mxu0 0
    %125 = vmatprep.subr.bf16.mxu0 0
    %126 = vmatpush2.bf16.msra.mxu0 0
    %127 = vmatprep.subr.bf16.mxu0 0
    %128 = vmatpush2.bf16.msra.mxu0 0
    %129 = vmatprep.subr.bf16.mxu0 0
    %130 = vmatpush2.bf16.msra.mxu0 0
    %131 = vmatprep.subr.bf16.mxu0 0
    %132 = vmatpush2.bf16.msra.mxu0 0
    %133 = vmatprep.subr.bf16.mxu0 0
    %134 = vmatpush2.bf16.msra.mxu0 0
    %135 = vmatprep.subr.bf16.mxu0 0
    %136 = vmatpush2.bf16.msra.mxu0 0
    %137 = vmatprep.subr.bf16.mxu0 0
    %138 = vmatpush2.bf16.msra.mxu0 0
    %139 = vmatprep.mubr.bf16.mxu0 0
    %140 = vmatmul.mubr.bf16.gmra.mxu0 %v105
    %v141 = vpop.f32.mrf.mxu0
    %v142 = vadd.f32 %v56, %v141
    %v143 = vpop.f32.mrf.mxu0
    %v144 = vadd.f32 %v60, %v143
    %v145 = vpop.f32.mrf.mxu0
    %v146 = vpop.f32.mrf.mxu0
    %147 = vdwg.mxu0
    %v148 = vmul.f32 %v142, %v142
    %v149 = vmul.f32 %v144, %v144
    %v150 = vadd.f32 %v148, %v149
    %151 = vadd.xlane.f32.xlu0 %v150
    %v152 = vpop.xlane.xlu0 %151
    %v153 = vmax.f32 %v152, 1e-24
    %v154 = vrsqrt.pop %v153
    %v155 = vmul.f32 %v142, %v154
    %v156 = vmul.f32 %v144, %v154
    %157 = vst [vmem:[#allocation7] sm:$0xff] %v155
    %158 = vst [vmem:[#allocation7 + $0x8] sm:$0xff] %v156
    // Predicated region
    $region22: #{tpu_custom_call.1} parent=1 // pred_check
      _
    $region23: #{tpu_custom_call.1} parent=1 // pred_check_branch
      %160 = sbr.rel (0) target = $region25
    $region24: #{tpu_custom_call.1} parent=1 // pred_region
      %s162 = ssub.s32 256, 256
      %163 = vsyncadd [#allocation4], %s162
      %s165 = sshll.u32 [#allocation7], 4
      %s166 = int_to_ptr.vmem [resolvable:$true] %s165
      %168 = dma.vmem_to_hbm [thread:$0]  %s166, 256, %s3, [#allocation4]
    $region25: #{tpu_custom_call.1} parent=1 // pred_fallthru
      _
    // Predicated region
    $region26: #{tpu_custom_call.1} parent=1 // pred_check
      _
    $region27: #{tpu_custom_call.1} parent=1 // pred_check_branch
      %170 = sbr.rel (0) target = $region29
    $region28: #{tpu_custom_call.1} parent=1 // pred_region
      %171 = dma.done [#allocation4], 256
    $region29: #{tpu_custom_call.1} parent=1 // pred_fallthru
      _
    %172 = vsyncpa [#allocation3], 1
    %173 = vsyncpa [#allocation6], 1
    %174 = vsyncpa [#allocation4], 1

</llo_original>
